<compile_context>
chip_gen: v7x
topology: tpu7x:2x2x1
jax: 0.10.0
libtpu: 0.0.40
codegen_flags: <defaults>
</compile_context>

<pallas_src>
import jax
import jax.numpy as jnp
from jax.experimental import pallas as pl
from jax.experimental.pallas import tpu as pltpu

STATE_DIM = 4
ACTION_DIM = 1
IN_DIM = STATE_DIM + ACTION_DIM   # 5
HIDDEN = 200
OUT_DIM = STATE_DIM               # 4

DEFAULT_TILE_B = 256              # batch rows (lanes) per grid step, multiple of 128


def mlp_dynamics_kernel(xt_ref, w1_ref, b1_ref, w2_ref, b2_ref, ot_ref):
    """One batch tile, lanes = batch.

    xt : (IN_DIM, TB)       transposed input tile
    w1 : (HIDDEN, IN_DIM)   == PyTorch linear1.weight
    b1 : (HIDDEN, 1)
    w2 : (OUT_DIM, HIDDEN)  == PyTorch linear2.weight
    b2 : (OUT_DIM, 1)
    out: (OUT_DIM, TB)      transposed output tile (lane-dense stores)
    """
    xt = xt_ref[...]
    w1 = w1_ref[...]

    # Layer 1: K = IN_DIM = 5 would leave the MXU ~empty (pure fill/drain), so
    # compute it as 5 VPU broadcast-FMAs (rank-1 outer products), statically unrolled.
    h = w1[:, 0:1] * xt[0:1, :]
    for k in range(1, IN_DIM):
        h = h + w1[:, k:k + 1] * xt[k:k + 1, :]
    h = jnp.maximum(h + b1_ref[...], 0.0)                      # bias + ReLU on the VPU

    # Layer 2: K = HIDDEN = 200 contraction on the MXU; N = TB is lane-dense.
    y = jnp.dot(w2_ref[...], h, preferred_element_type=jnp.float32)
    ot_ref[...] = (y + b2_ref[...]).astype(ot_ref.dtype)


def mlp_dynamics_forward(x, w1, b1, w2, b2, *, tile_b=DEFAULT_TILE_B):
    """x: (B, IN_DIM) f32 -> (B, OUT_DIM) f32.   y = relu(x @ W1.T + b1) @ W2.T + b2."""
    B = x.shape[0]
    n_tiles = pl.cdiv(B, tile_b)
    b_pad = n_tiles * tile_b
    if b_pad != B:
        x = jnp.pad(x, ((0, b_pad - B), (0, 0)))
    xt = x.T                                                    # (IN_DIM, b_pad), lanes = batch

    yt = pl.pallas_call(
        mlp_dynamics_kernel,
        out_shape=jax.ShapeDtypeStruct((OUT_DIM, b_pad), jnp.float32),
        grid_spec=pl.GridSpec(
            grid=(n_tiles,),
            in_specs=[
                pl.BlockSpec((IN_DIM, tile_b), lambda i: (0, i)),
                # Weights/biases: constant index_map -> DMA'd once, stay resident in VMEM.
                pl.BlockSpec((HIDDEN, IN_DIM), lambda i: (0, 0)),
                pl.BlockSpec((HIDDEN, 1), lambda i: (0, 0)),
                pl.BlockSpec((OUT_DIM, HIDDEN), lambda i: (0, 0)),
                pl.BlockSpec((OUT_DIM, 1), lambda i: (0, 0)),
            ],
            out_specs=pl.BlockSpec((OUT_DIM, tile_b), lambda i: (0, i)),
        ),
        compiler_params=pltpu.CompilerParams(
            # Batch tiles are independent -> shardable across the 2 TCs on v7x.
            dimension_semantics=("parallel",)),
    )(xt, w1, b1, w2, b2)

    return yt.T[:B]


def init_params(key):
    """Deterministic init mirroring torch.nn.Linear's U(-1/sqrt(fan_in), 1/sqrt(fan_in)).

    Weights are kept in the PyTorch (out_features, in_features) layout; biases are
    stored as columns so they broadcast over the lane (=batch) axis in-kernel.
    """
    k1, k2, k3, k4 = jax.random.split(key, 4)
    bound1 = 1.0 / jnp.sqrt(jnp.float32(IN_DIM))
    bound2 = 1.0 / jnp.sqrt(jnp.float32(HIDDEN))
    w1 = jax.random.uniform(k1, (HIDDEN, IN_DIM), jnp.float32, -bound1, bound1)
    b1 = jax.random.uniform(k2, (HIDDEN, 1), jnp.float32, -bound1, bound1)
    w2 = jax.random.uniform(k3, (OUT_DIM, HIDDEN), jnp.float32, -bound2, bound2)
    b2 = jax.random.uniform(k4, (OUT_DIM, 1), jnp.float32, -bound2, bound2)
    return w1, b1, w2, b2


def reference_forward(x, w1, b1, w2, b2):
    h = jnp.maximum(x @ w1.T + b1[:, 0], 0.0)
    return h @ w2.T + b2[:, 0]


if __name__ == "__main__":
    key = jax.random.PRNGKey(0)
    k_params, k_x = jax.random.split(key)
    w1, b1, w2, b2 = init_params(k_params)

    batch = 8
    x = jax.random.normal(k_x, (batch, IN_DIM), jnp.float32)

    out = mlp_dynamics_forward(x, w1, b1, w2, b2)
    out = jax.block_until_ready(out)

    ref = reference_forward(x, w1, b1, w2, b2)
    assert out.shape == (batch, OUT_DIM)
    assert jnp.allclose(out, ref, atol=1e-5, rtol=1e-5)

    print("KERNEL_OK")
</pallas_src>

<mosaic_0001>
module attributes {stable_mosaic.version = 11 : i64} {
  func.func @mlp_dynamics_kernel(%arg0: i32, %arg1: memref<5x256xf32, #tpu.memory_space<vmem>>, %arg2: memref<200x5xf32, #tpu.memory_space<vmem>>, %arg3: memref<200x1xf32, #tpu.memory_space<vmem>>, %arg4: memref<4x200xf32, #tpu.memory_space<vmem>>, %arg5: memref<4x1xf32, #tpu.memory_space<vmem>>, %arg6: memref<4x256xf32, #tpu.memory_space<vmem>>) attributes {dimension_semantics = [#tpu.dimension_semantics<parallel>], iteration_bounds = array<i64: 1>, scalar_prefetch = 0 : i64, scratch_operands = 0 : i64, tpu.core_type = #tpu.core_type<tc>, window_params = [{transform_indices = @transform_0, window_bounds = array<i64: 5, 256>}, {pipeline_mode = #tpu.pipeline_mode<synchronous>, transform_indices = @transform_1, window_bounds = array<i64: 200, 5>}, {pipeline_mode = #tpu.pipeline_mode<synchronous>, transform_indices = @transform_2, window_bounds = array<i64: 200, 1>}, {pipeline_mode = #tpu.pipeline_mode<synchronous>, transform_indices = @transform_3, window_bounds = array<i64: 4, 200>}, {pipeline_mode = #tpu.pipeline_mode<synchronous>, transform_indices = @transform_4, window_bounds = array<i64: 4, 1>}, {transform_indices = @transform_5, window_bounds = array<i64: 4, 256>}]} {
    %c0 = arith.constant 0 : index
    %c0_0 = arith.constant 0 : index
    %0 = vector.load %arg1[%c0, %c0_0] : memref<5x256xf32, #tpu.memory_space<vmem>>, vector<5x256xf32>
    %c0_1 = arith.constant 0 : index
    %c0_2 = arith.constant 0 : index
    %1 = vector.load %arg2[%c0_1, %c0_2] : memref<200x5xf32, #tpu.memory_space<vmem>>, vector<200x5xf32>
    %2 = vector.extract_strided_slice %1 {offsets = [0, 0], sizes = [200, 1], strides = [1, 1]} : vector<200x5xf32> to vector<200x1xf32>
    %3 = vector.extract_strided_slice %0 {offsets = [0, 0], sizes = [1, 256], strides = [1, 1]} : vector<5x256xf32> to vector<1x256xf32>
    %4 = vector.broadcast %2 : vector<200x1xf32> to vector<200x256xf32>
    %5 = vector.broadcast %3 : vector<1x256xf32> to vector<200x256xf32>
    %6 = arith.mulf %4, %5 : vector<200x256xf32>
    %7 = vector.extract_strided_slice %1 {offsets = [0, 1], sizes = [200, 1], strides = [1, 1]} : vector<200x5xf32> to vector<200x1xf32>
    %8 = vector.extract_strided_slice %0 {offsets = [1, 0], sizes = [1, 256], strides = [1, 1]} : vector<5x256xf32> to vector<1x256xf32>
    %9 = vector.broadcast %7 : vector<200x1xf32> to vector<200x256xf32>
    %10 = vector.broadcast %8 : vector<1x256xf32> to vector<200x256xf32>
    %11 = arith.mulf %9, %10 : vector<200x256xf32>
    %12 = arith.addf %6, %11 : vector<200x256xf32>
    %13 = vector.extract_strided_slice %1 {offsets = [0, 2], sizes = [200, 1], strides = [1, 1]} : vector<200x5xf32> to vector<200x1xf32>
    %14 = vector.extract_strided_slice %0 {offsets = [2, 0], sizes = [1, 256], strides = [1, 1]} : vector<5x256xf32> to vector<1x256xf32>
    %15 = vector.broadcast %13 : vector<200x1xf32> to vector<200x256xf32>
    %16 = vector.broadcast %14 : vector<1x256xf32> to vector<200x256xf32>
    %17 = arith.mulf %15, %16 : vector<200x256xf32>
    %18 = arith.addf %12, %17 : vector<200x256xf32>
    %19 = vector.extract_strided_slice %1 {offsets = [0, 3], sizes = [200, 1], strides = [1, 1]} : vector<200x5xf32> to vector<200x1xf32>
    %20 = vector.extract_strided_slice %0 {offsets = [3, 0], sizes = [1, 256], strides = [1, 1]} : vector<5x256xf32> to vector<1x256xf32>
    %21 = vector.broadcast %19 : vector<200x1xf32> to vector<200x256xf32>
    %22 = vector.broadcast %20 : vector<1x256xf32> to vector<200x256xf32>
    %23 = arith.mulf %21, %22 : vector<200x256xf32>
    %24 = arith.addf %18, %23 : vector<200x256xf32>
    %25 = vector.extract_strided_slice %1 {offsets = [0, 4], sizes = [200, 1], strides = [1, 1]} : vector<200x5xf32> to vector<200x1xf32>
    %26 = vector.extract_strided_slice %0 {offsets = [4, 0], sizes = [1, 256], strides = [1, 1]} : vector<5x256xf32> to vector<1x256xf32>
    %27 = vector.broadcast %25 : vector<200x1xf32> to vector<200x256xf32>
    %28 = vector.broadcast %26 : vector<1x256xf32> to vector<200x256xf32>
    %29 = arith.mulf %27, %28 : vector<200x256xf32>
    %30 = arith.addf %24, %29 : vector<200x256xf32>
    %c0_3 = arith.constant 0 : index
    %c0_4 = arith.constant 0 : index
    %31 = vector.load %arg3[%c0_3, %c0_4] : memref<200x1xf32, #tpu.memory_space<vmem>>, vector<200x1xf32>
    %32 = vector.broadcast %31 : vector<200x1xf32> to vector<200x256xf32>
    %33 = arith.addf %30, %32 : vector<200x256xf32>
    %cst = arith.constant 0.000000e+00 : f32
    %34 = vector.broadcast %cst : f32 to vector<200x256xf32>
    %35 = arith.maximumf %33, %34 : vector<200x256xf32>
    %c0_5 = arith.constant 0 : index
    %c0_6 = arith.constant 0 : index
    %36 = vector.load %arg4[%c0_5, %c0_6] : memref<4x200xf32, #tpu.memory_space<vmem>>, vector<4x200xf32>
    %cst_7 = arith.constant dense<0.000000e+00> : vector<4x256xf32>
    %37 = tpu.matmul %36, %35, %cst_7 {dimension_numbers = #tpu.dot_dimension_numbers<[1], [0], [0], [1], [0, 0, 1, 1], [], []>} : vector<4x200xf32>, vector<200x256xf32>, vector<4x256xf32> -> vector<4x256xf32>
    %c0_8 = arith.constant 0 : index
    %c0_9 = arith.constant 0 : index
    %38 = vector.load %arg5[%c0_8, %c0_9] : memref<4x1xf32, #tpu.memory_space<vmem>>, vector<4x1xf32>
    %39 = vector.broadcast %38 : vector<4x1xf32> to vector<4x256xf32>
    %40 = arith.addf %37, %39 : vector<4x256xf32>
    %c0_10 = arith.constant 0 : index
    %c0_11 = arith.constant 0 : index
    %41 = vector.load %arg6[%c0_10, %c0_11] : memref<4x256xf32, #tpu.memory_space<vmem>>, vector<4x256xf32>
    tpu.vector_store %arg6[%c0_10, %c0_11], %40 {strides = array<i32>} : memref<4x256xf32, #tpu.memory_space<vmem>>, vector<4x256xf32>,
    return
  }
  func.func @transform_0(%arg0: i32) -> (i32, i32) {
    %c0_i32 = arith.constant 0 : i32
    %c0_i32_0 = arith.constant 0 : i32
    return %c0_i32, %arg0 : i32, i32
  }
  func.func @transform_1(%arg0: i32) -> (i32, i32) {
    %c0_i32 = arith.constant 0 : i32
    %c0_i32_0 = arith.constant 0 : i32
    %c0_i32_1 = arith.constant 0 : i32
    return %c0_i32, %c0_i32_0 : i32, i32
  }
  func.func @transform_2(%arg0: i32) -> (i32, i32) {
    %c0_i32 = arith.constant 0 : i32
    %c0_i32_0 = arith.constant 0 : i32
    %c0_i32_1 = arith.constant 0 : i32
    return %c0_i32, %c0_i32_0 : i32, i32
  }
  func.func @transform_3(%arg0: i32) -> (i32, i32) {
    %c0_i32 = arith.constant 0 : i32
    %c0_i32_0 = arith.constant 0 : i32
    %c0_i32_1 = arith.constant 0 : i32
    return %c0_i32, %c0_i32_0 : i32, i32
  }
  func.func @transform_4(%arg0: i32) -> (i32, i32) {
    %c0_i32 = arith.constant 0 : i32
    %c0_i32_0 = arith.constant 0 : i32
    %c0_i32_1 = arith.constant 0 : i32
    return %c0_i32, %c0_i32_0 : i32, i32
  }
  func.func @transform_5(%arg0: i32) -> (i32, i32) {
    %c0_i32 = arith.constant 0 : i32
    %c0_i32_0 = arith.constant 0 : i32
    return %c0_i32, %arg0 : i32, i32
  }
}

</mosaic_0001>

<llo_original>
// kernel: tpu_custom_call.1
$region0: #{tpu_custom_call.1}
  #allocation0 [shape = 'u32[]', space=smem, size = 0x4, offset = 0x4, fixed_abs, tag = 'smem constant byte address 0x4 - core index']
  #allocation1 [shape = 'u32[144,128]{1,0:T(1,128)}', space=vmem, size = 0x12000, scoped, tag = 'internal scratch']
  %s0 = inlined_call_operand.vmem [shape: f32[5,256], index: 0, kind: input, shape index: {}]
  %s1 = inlined_call_operand.vmem [shape: f32[200,5], index: 1, kind: input, shape index: {}]
  %s2 = inlined_call_operand.vmem [shape: f32[200,1], index: 2, kind: input, shape index: {}]
  %s3 = inlined_call_operand.vmem [shape: f32[4,200], index: 3, kind: input, shape index: {}]
  %s4 = inlined_call_operand.vmem [shape: f32[4,1], index: 4, kind: input, shape index: {}]
  %s5 = inlined_call_operand.hbm [shape: f32[4,256], index: 5, kind: output, shape index: {}]
  %s6 = sld [smem:[#allocation0]]
  $region30: #{tpu_custom_call.1} parent=0
    _
  %s8 = ssub.s32 1, %s6
  %s9 = scalar_select 0, %s8, %s6
  $region1: #{tpu_custom_call.1} parent=0
    #allocation2 [shape = 'u8[4096]{0}', space=vmem, size = 0x1000, scoped, tag = 'output window, operand 0, single buffered']
    #allocation3 [shape = 's32[1]{0}', space=sflag, size = 0x4, scoped, tag = 'scoped memory for tpu_custom_call.1']
    %10 = vsyncpa [#allocation3], 0
    // Predicated region
    $region2: #{tpu_custom_call.1} parent=1 // pred_check
      _
    $region3: #{tpu_custom_call.1} parent=1 // pred_check_branch
      %12 = sbr.rel (0) target = $region5
    $region4: #{tpu_custom_call.1} parent=1 // pred_region
      _
    $region5: #{tpu_custom_call.1} parent=1 // pred_fallthru
      _
    // Predicated region
    $region6: #{tpu_custom_call.1} parent=1 // pred_check
      _
    $region7: #{tpu_custom_call.1} parent=1 // pred_check_branch
      %14 = sbr.rel (0) target = $region9
    $region8: #{tpu_custom_call.1} parent=1 // pred_region
      _
    $region9: #{tpu_custom_call.1} parent=1 // pred_fallthru
      _
    // Predicated region
    $region10: #{tpu_custom_call.1} parent=1 // pred_check
      _
    $region11: #{tpu_custom_call.1} parent=1 // pred_check_branch
      %16 = sbr.rel (0) target = $region13
    $region12: #{tpu_custom_call.1} parent=1 // pred_region
      _
    $region13: #{tpu_custom_call.1} parent=1 // pred_fallthru
      _
    // Predicated region
    $region14: #{tpu_custom_call.1} parent=1 // pred_check
      _
    $region15: #{tpu_custom_call.1} parent=1 // pred_check_branch
      %18 = sbr.rel (0) target = $region17
    $region16: #{tpu_custom_call.1} parent=1 // pred_region
      _
    $region17: #{tpu_custom_call.1} parent=1 // pred_fallthru
      _
    // Predicated region
    $region18: #{tpu_custom_call.1} parent=1 // pred_check
      _
    $region19: #{tpu_custom_call.1} parent=1 // pred_check_branch
      %20 = sbr.rel (0) target = $region21
    $region20: #{tpu_custom_call.1} parent=1 // pred_region
      _
    $region21: #{tpu_custom_call.1} parent=1 // pred_fallthru
      _
    %v21 = vld [vmem:[%s0] sm:$0x1f]
    %v22 = vld [vmem:[%s0 + $0x8] sm:$0x1f]
    %v23 = vld [vmem:[%s1] sm:$0xff]
    %v24 = vld [vmem:[%s1 + $0x8] sm:$0xff]
    %v25 = vld [vmem:[%s1 + $0x10] sm:$0xff]
    %v26 = vld [vmem:[%s1 + $0x18] sm:$0xff]
    %v27 = vld [vmem:[%s1 + $0x20] sm:$0xff]
    %v28 = vld [vmem:[%s1 + $0x28] sm:$0xff]
    %v29 = vld [vmem:[%s1 + $0x30] sm:$0xff]
    %v30 = vld [vmem:[%s1 + $0x38] sm:$0xff]
    %v31 = vld [vmem:[%s1 + $0x40] sm:$0xff]
    %v32 = vld [vmem:[%s1 + $0x48] sm:$0xff]
    %v33 = vld [vmem:[%s1 + $0x50] sm:$0xff]
    %v34 = vld [vmem:[%s1 + $0x58] sm:$0xff]
    %v35 = vld [vmem:[%s1 + $0x60] sm:$0xff]
    %v36 = vld [vmem:[%s1 + $0x68] sm:$0xff]
    %v37 = vld [vmem:[%s1 + $0x70] sm:$0xff]
    %v38 = vld [vmem:[%s1 + $0x78] sm:$0xff]
    %v39 = vld [vmem:[%s1 + $0x80] sm:$0xff]
    %v40 = vld [vmem:[%s1 + $0x88] sm:$0xff]
    %v41 = vld [vmem:[%s1 + $0x90] sm:$0xff]
    %v42 = vld [vmem:[%s1 + $0x98] sm:$0xff]
    %v43 = vld [vmem:[%s1 + $0xa0] sm:$0xff]
    %v44 = vld [vmem:[%s1 + $0xa8] sm:$0xff]
    %v45 = vld [vmem:[%s1 + $0xb0] sm:$0xff]
    %v46 = vld [vmem:[%s1 + $0xb8] sm:$0xff]
    %v47 = vld [vmem:[%s1 + $0xc0] sm:$0xff]
    %49 = vset.pattern.permute.xlu0 0
    %50 = vperm.xlu0 %49, %v23
    %v51 = vpop.permute.xlu0 %50
    %54 = vset.pattern.permute.xlu0 0
    %55 = vperm.xlu0 %54, %v24
    %v56 = vpop.permute.xlu0 %55
    %59 = vset.pattern.permute.xlu0 0
    %60 = vperm.xlu0 %59, %v25
    %v61 = vpop.permute.xlu0 %60
    %64 = vset.pattern.permute.xlu0 0
    %65 = vperm.xlu0 %64, %v26
    %v66 = vpop.permute.xlu0 %65
    %69 = vset.pattern.permute.xlu0 0
    %70 = vperm.xlu0 %69, %v27
    %v71 = vpop.permute.xlu0 %70
    %74 = vset.pattern.permute.xlu0 0
    %75 = vperm.xlu0 %74, %v28
    %v76 = vpop.permute.xlu0 %75
    %79 = vset.pattern.permute.xlu0 0
    %80 = vperm.xlu0 %79, %v29
    %v81 = vpop.permute.xlu0 %80
    %84 = vset.pattern.permute.xlu0 0
    %85 = vperm.xlu0 %84, %v30
    %v86 = vpop.permute.xlu0 %85
    %89 = vset.pattern.permute.xlu0 0
    %90 = vperm.xlu0 %89, %v31
    %v91 = vpop.permute.xlu0 %90
    %94 = vset.pattern.permute.xlu0 0
    %95 = vperm.xlu0 %94, %v32
    %v96 = vpop.permute.xlu0 %95
    %99 = vset.pattern.permute.xlu0 0
    %100 = vperm.xlu0 %99, %v33
    %v101 = vpop.permute.xlu0 %100
    %104 = vset.pattern.permute.xlu0 0
    %105 = vperm.xlu0 %104, %v34
    %v106 = vpop.permute.xlu0 %105
    %109 = vset.pattern.permute.xlu0 0
    %110 = vperm.xlu0 %109, %v35
    %v111 = vpop.permute.xlu0 %110
    %114 = vset.pattern.permute.xlu0 0
    %115 = vperm.xlu0 %114, %v36
    %v116 = vpop.permute.xlu0 %115
    %119 = vset.pattern.permute.xlu0 0
    %120 = vperm.xlu0 %119, %v37
    %v121 = vpop.permute.xlu0 %120
    %124 = vset.pattern.permute.xlu0 0
    %125 = vperm.xlu0 %124, %v38
    %v126 = vpop.permute.xlu0 %125
    %129 = vset.pattern.permute.xlu0 0
    %130 = vperm.xlu0 %129, %v39
    %v131 = vpop.permute.xlu0 %130
    %134 = vset.pattern.permute.xlu0 0
    %135 = vperm.xlu0 %134, %v40
    %v136 = vpop.permute.xlu0 %135
    %139 = vset.pattern.permute.xlu0 0
    %140 = vperm.xlu0 %139, %v41
    %v141 = vpop.permute.xlu0 %140
    %144 = vset.pattern.permute.xlu0 0
    %145 = vperm.xlu0 %144, %v42
    %v146 = vpop.permute.xlu0 %145
    %149 = vset.pattern.permute.xlu0 0
    %150 = vperm.xlu0 %149, %v43
    %v151 = vpop.permute.xlu0 %150
    %154 = vset.pattern.permute.xlu0 0
    %155 = vperm.xlu0 %154, %v44
    %v156 = vpop.permute.xlu0 %155
    %159 = vset.pattern.permute.xlu0 0
    %160 = vperm.xlu0 %159, %v45
    %v161 = vpop.permute.xlu0 %160
    %164 = vset.pattern.permute.xlu0 0
    %165 = vperm.xlu0 %164, %v46
    %v166 = vpop.permute.xlu0 %165
    %169 = vset.pattern.permute.xlu0 0
    %170 = vperm.xlu0 %169, %v47
    %v171 = vpop.permute.xlu0 %170
    %v173 = vlaneseq
    %v174 = vshrl.u32 %v173, 7
    %v175 = vsub.s32 0, %v174
    %v176 = vrot.slane %v21, %v175
    %v177 = vlaneseq
    %v178 = vshrl.u32 %v177, 7
    %v179 = vsub.s32 0, %v178
    %v180 = vrot.slane %v22, %v179
    %v181 = vmul.f32 %v51, %v176
    %v182 = vmul.f32 %v51, %v180
    %v183 = vmul.f32 %v56, %v176
    %v184 = vmul.f32 %v56, %v180
    %v185 = vmul.f32 %v61, %v176
    %v186 = vmul.f32 %v61, %v180
    %v187 = vmul.f32 %v66, %v176
    %v188 = vmul.f32 %v66, %v180
    %v189 = vmul.f32 %v71, %v176
    %v190 = vmul.f32 %v71, %v180
    %v191 = vmul.f32 %v76, %v176
    %v192 = vmul.f32 %v76, %v180
    %v193 = vmul.f32 %v81, %v176
    %v194 = vmul.f32 %v81, %v180
    %v195 = vmul.f32 %v86, %v176
    %v196 = vmul.f32 %v86, %v180
    %v197 = vmul.f32 %v91, %v176
    %v198 = vmul.f32 %v91, %v180
    %v199 = vmul.f32 %v96, %v176
    %v200 = vmul.f32 %v96, %v180
    %v201 = vmul.f32 %v101, %v176
    %v202 = vmul.f32 %v101, %v180
    %v203 = vmul.f32 %v106, %v176
    %v204 = vmul.f32 %v106, %v180
    %v205 = vmul.f32 %v111, %v176
    %v206 = vmul.f32 %v111, %v180
    %v207 = vmul.f32 %v116, %v176
    %v208 = vmul.f32 %v116, %v180
    %v209 = vmul.f32 %v121, %v176
    %v210 = vmul.f32 %v121, %v180
    %v211 = vmul.f32 %v126, %v176
    %v212 = vmul.f32 %v126, %v180
    %v213 = vmul.f32 %v131, %v176
    %v214 = vmul.f32 %v131, %v180
    %v215 = vmul.f32 %v136, %v176
    %v216 = vmul.f32 %v136, %v180
    %v217 = vmul.f32 %v141, %v176
    %v218 = vmul.f32 %v141, %v180
    %v219 = vmul.f32 %v146, %v176
    %v220 = vmul.f32 %v146, %v180
    %v221 = vmul.f32 %v151, %v176
    %v222 = vmul.f32 %v151, %v180
    %v223 = vmul.f32 %v156, %v176
    %v224 = vmul.f32 %v156, %v180
    %v225 = vmul.f32 %v161, %v176
    %v226 = vmul.f32 %v161, %v180
    %v227 = vmul.f32 %v166, %v176
    %v228 = vmul.f32 %v166, %v180
    %v229 = vmul.f32 %v171, %v176
    %v230 = vmul.f32 %v171, %v180
    %231 = vset.pattern.permute.xlu0 1
    %232 = vperm.xlu0 %231, %v23
    %v233 = vpop.permute.xlu0 %232
    %235 = vset.pattern.permute.xlu0 1
    %236 = vperm.xlu0 %235, %v24
    %v237 = vpop.permute.xlu0 %236
    %239 = vset.pattern.permute.xlu0 1
    %240 = vperm.xlu0 %239, %v25
    %v241 = vpop.permute.xlu0 %240
    %243 = vset.pattern.permute.xlu0 1
    %244 = vperm.xlu0 %243, %v26
    %v245 = vpop.permute.xlu0 %244
    %247 = vset.pattern.permute.xlu0 1
    %248 = vperm.xlu0 %247, %v27
    %v249 = vpop.permute.xlu0 %248
    %251 = vset.pattern.permute.xlu0 1
    %252 = vperm.xlu0 %251, %v28
    %v253 = vpop.permute.xlu0 %252
    %255 = vset.pattern.permute.xlu0 1
    %256 = vperm.xlu0 %255, %v29
    %v257 = vpop.permute.xlu0 %256
    %259 = vset.pattern.permute.xlu0 1
    %260 = vperm.xlu0 %259, %v30
    %v261 = vpop.permute.xlu0 %260
    %263 = vset.pattern.permute.xlu0 1
    %264 = vperm.xlu0 %263, %v31
    %v265 = vpop.permute.xlu0 %264
    %267 = vset.pattern.permute.xlu0 1
    %268 = vperm.xlu0 %267, %v32
    %v269 = vpop.permute.xlu0 %268
    %271 = vset.pattern.permute.xlu0 1
    %272 = vperm.xlu0 %271, %v33
    %v273 = vpop.permute.xlu0 %272
    %275 = vset.pattern.permute.xlu0 1
    %276 = vperm.xlu0 %275, %v34
    %v277 = vpop.permute.xlu0 %276
    %279 = vset.pattern.permute.xlu0 1
    %280 = vperm.xlu0 %279, %v35
    %v281 = vpop.permute.xlu0 %280
    %283 = vset.pattern.permute.xlu0 1
    %284 = vperm.xlu0 %283, %v36
    %v285 = vpop.permute.xlu0 %284
    %287 = vset.pattern.permute.xlu0 1
    %288 = vperm.xlu0 %287, %v37
    %v289 = vpop.permute.xlu0 %288
    %291 = vset.pattern.permute.xlu0 1
    %292 = vperm.xlu0 %291, %v38
    %v293 = vpop.permute.xlu0 %292
    %295 = vset.pattern.permute.xlu0 1
    %296 = vperm.xlu0 %295, %v39
    %v297 = vpop.permute.xlu0 %296
    %299 = vset.pattern.permute.xlu0 1
    %300 = vperm.xlu0 %299, %v40
    %v301 = vpop.permute.xlu0 %300
    %303 = vset.pattern.permute.xlu0 1
    %304 = vperm.xlu0 %303, %v41
    %v305 = vpop.permute.xlu0 %304
    %307 = vset.pattern.permute.xlu0 1
    %308 = vperm.xlu0 %307, %v42
    %v309 = vpop.permute.xlu0 %308
    %311 = vset.pattern.permute.xlu0 1
    %312 = vperm.xlu0 %311, %v43
    %v313 = vpop.permute.xlu0 %312
    %315 = vset.pattern.permute.xlu0 1
    %316 = vperm.xlu0 %315, %v44
    %v317 = vpop.permute.xlu0 %316
    %319 = vset.pattern.permute.xlu0 1
    %320 = vperm.xlu0 %319, %v45
    %v321 = vpop.permute.xlu0 %320
    %323 = vset.pattern.permute.xlu0 1
    %324 = vperm.xlu0 %323, %v46
    %v325 = vpop.permute.xlu0 %324
    %327 = vset.pattern.permute.xlu0 1
    %328 = vperm.xlu0 %327, %v47
    %v329 = vpop.permute.xlu0 %328
    %v331 = vlaneseq
    %v332 = vshrl.u32 %v331, 7
    %v333 = vsub.s32 1, %v332
    %v334 = vrot.slane %v21, %v333
    %v335 = vlaneseq
    %v336 = vshrl.u32 %v335, 7
    %v337 = vsub.s32 1, %v336
    %v338 = vrot.slane %v22, %v337
    %v339 = vmul.f32 %v233, %v334
    %v340 = vmul.f32 %v233, %v338
    %v341 = vmul.f32 %v237, %v334
    %v342 = vmul.f32 %v237, %v338
    %v343 = vmul.f32 %v241, %v334
    %v344 = vmul.f32 %v241, %v338
    %v345 = vmul.f32 %v245, %v334
    %v346 = vmul.f32 %v245, %v338
    %v347 = vmul.f32 %v249, %v334
    %v348 = vmul.f32 %v249, %v338
    %v349 = vmul.f32 %v253, %v334
    %v350 = vmul.f32 %v253, %v338
    %v351 = vmul.f32 %v257, %v334
    %v352 = vmul.f32 %v257, %v338
    %v353 = vmul.f32 %v261, %v334
    %v354 = vmul.f32 %v261, %v338
    %v355 = vmul.f32 %v265, %v334
    %v356 = vmul.f32 %v265, %v338
    %v357 = vmul.f32 %v269, %v334
    %v358 = vmul.f32 %v269, %v338
    %v359 = vmul.f32 %v273, %v334
    %v360 = vmul.f32 %v273, %v338
    %v361 = vmul.f32 %v277, %v334
    %v362 = vmul.f32 %v277, %v338
    %v363 = vmul.f32 %v281, %v334
    %v364 = vmul.f32 %v281, %v338
    %v365 = vmul.f32 %v285, %v334
    %v366 = vmul.f32 %v285, %v338
    %v367 = vmul.f32 %v289, %v334
    %v368 = vmul.f32 %v289, %v338
    %v369 = vmul.f32 %v293, %v334
    %v370 = vmul.f32 %v293, %v338
    %v371 = vmul.f32 %v297, %v334
    %v372 = vmul.f32 %v297, %v338
    %v373 = vmul.f32 %v301, %v334
    %v374 = vmul.f32 %v301, %v338
    %v375 = vmul.f32 %v305, %v334
    %v376 = vmul.f32 %v305, %v338
    %v377 = vmul.f32 %v309, %v334
    %v378 = vmul.f32 %v309, %v338
    %v379 = vmul.f32 %v313, %v334
    %v380 = vmul.f32 %v313, %v338
    %v381 = vmul.f32 %v317, %v334
    %v382 = vmul.f32 %v317, %v338
    %v383 = vmul.f32 %v321, %v334
    %v384 = vmul.f32 %v321, %v338
    %v385 = vmul.f32 %v325, %v334
    %v386 = vmul.f32 %v325, %v338
    %v387 = vmul.f32 %v329, %v334
    %v388 = vmul.f32 %v329, %v338
    %v389 = vadd.f32 %v181, %v339
    %v390 = vadd.f32 %v182, %v340
    %v391 = vadd.f32 %v183, %v341
    %v392 = vadd.f32 %v184, %v342
    %v393 = vadd.f32 %v185, %v343
    %v394 = vadd.f32 %v186, %v344
    %v395 = vadd.f32 %v187, %v345
    %v396 = vadd.f32 %v188, %v346
    %v397 = vadd.f32 %v189, %v347
    %v398 = vadd.f32 %v190, %v348
    %v399 = vadd.f32 %v191, %v349
    %v400 = vadd.f32 %v192, %v350
    %v401 = vadd.f32 %v193, %v351
    %v402 = vadd.f32 %v194, %v352
    %v403 = vadd.f32 %v195, %v353
    %v404 = vadd.f32 %v196, %v354
    %v405 = vadd.f32 %v197, %v355
    %v406 = vadd.f32 %v198, %v356
    %v407 = vadd.f32 %v199, %v357
    %v408 = vadd.f32 %v200, %v358
    %v409 = vadd.f32 %v201, %v359
    %v410 = vadd.f32 %v202, %v360
    %v411 = vadd.f32 %v203, %v361
    %v412 = vadd.f32 %v204, %v362
    %v413 = vadd.f32 %v205, %v363
    %v414 = vadd.f32 %v206, %v364
    %v415 = vadd.f32 %v207, %v365
    %v416 = vadd.f32 %v208, %v366
    %v417 = vadd.f32 %v209, %v367
    %v418 = vadd.f32 %v210, %v368
    %v419 = vadd.f32 %v211, %v369
    %v420 = vadd.f32 %v212, %v370
    %v421 = vadd.f32 %v213, %v371
    %v422 = vadd.f32 %v214, %v372
    %v423 = vadd.f32 %v215, %v373
    %v424 = vadd.f32 %v216, %v374
    %v425 = vadd.f32 %v217, %v375
    %v426 = vadd.f32 %v218, %v376
    %v427 = vadd.f32 %v219, %v377
    %v428 = vadd.f32 %v220, %v378
    %v429 = vadd.f32 %v221, %v379
    %v430 = vadd.f32 %v222, %v380
    %v431 = vadd.f32 %v223, %v381
    %v432 = vadd.f32 %v224, %v382
    %v433 = vadd.f32 %v225, %v383
    %v434 = vadd.f32 %v226, %v384
    %v435 = vadd.f32 %v227, %v385
    %v436 = vadd.f32 %v228, %v386
    %v437 = vadd.f32 %v229, %v387
    %v438 = vadd.f32 %v230, %v388
    %439 = vset.pattern.permute.xlu0 2
    %440 = vperm.xlu0 %439, %v23
    %v441 = vpop.permute.xlu0 %440
    %443 = vset.pattern.permute.xlu0 2
    %444 = vperm.xlu0 %443, %v24
    %v445 = vpop.permute.xlu0 %444
    %447 = vset.pattern.permute.xlu0 2
    %448 = vperm.xlu0 %447, %v25
    %v449 = vpop.permute.xlu0 %448
    %451 = vset.pattern.permute.xlu0 2
    %452 = vperm.xlu0 %451, %v26
    %v453 = vpop.permute.xlu0 %452
    %455 = vset.pattern.permute.xlu0 2
    %456 = vperm.xlu0 %455, %v27
    %v457 = vpop.permute.xlu0 %456
    %459 = vset.pattern.permute.xlu0 2
    %460 = vperm.xlu0 %459, %v28
    %v461 = vpop.permute.xlu0 %460
    %463 = vset.pattern.permute.xlu0 2
    %464 = vperm.xlu0 %463, %v29
    %v465 = vpop.permute.xlu0 %464
    %467 = vset.pattern.permute.xlu0 2
    %468 = vperm.xlu0 %467, %v30
    %v469 = vpop.permute.xlu0 %468
    %471 = vset.pattern.permute.xlu0 2
    %472 = vperm.xlu0 %471, %v31
    %v473 = vpop.permute.xlu0 %472
    %475 = vset.pattern.permute.xlu0 2
    %476 = vperm.xlu0 %475, %v32
    %v477 = vpop.permute.xlu0 %476
    %479 = vset.pattern.permute.xlu0 2
    %480 = vperm.xlu0 %479, %v33
    %v481 = vpop.permute.xlu0 %480
    %483 = vset.pattern.permute.xlu0 2
    %484 = vperm.xlu0 %483, %v34
    %v485 = vpop.permute.xlu0 %484
    %487 = vset.pattern.permute.xlu0 2
    %488 = vperm.xlu0 %487, %v35
    %v489 = vpop.permute.xlu0 %488
    %491 = vset.pattern.permute.xlu0 2
    %492 = vperm.xlu0 %491, %v36
    %v493 = vpop.permute.xlu0 %492
    %495 = vset.pattern.permute.xlu0 2
    %496 = vperm.xlu0 %495, %v37
    %v497 = vpop.permute.xlu0 %496
    %499 = vset.pattern.permute.xlu0 2
    %500 = vperm.xlu0 %499, %v38
    %v501 = vpop.permute.xlu0 %500
    %503 = vset.pattern.permute.xlu0 2
    %504 = vperm.xlu0 %503, %v39
    %v505 = vpop.permute.xlu0 %504
    %507 = vset.pattern.permute.xlu0 2
    %508 = vperm.xlu0 %507, %v40
    %v509 = vpop.permute.xlu0 %508
    %511 = vset.pattern.permute.xlu0 2
    %512 = vperm.xlu0 %511, %v41
    %v513 = vpop.permute.xlu0 %512
    %515 = vset.pattern.permute.xlu0 2
    %516 = vperm.xlu0 %515, %v42
    %v517 = vpop.permute.xlu0 %516
    %519 = vset.pattern.permute.xlu0 2
    %520 = vperm.xlu0 %519, %v43
    %v521 = vpop.permute.xlu0 %520
    %523 = vset.pattern.permute.xlu0 2
    %524 = vperm.xlu0 %523, %v44
    %v525 = vpop.permute.xlu0 %524
    %527 = vset.pattern.permute.xlu0 2
    %528 = vperm.xlu0 %527, %v45
    %v529 = vpop.permute.xlu0 %528
    %531 = vset.pattern.permute.xlu0 2
    %532 = vperm.xlu0 %531, %v46
    %v533 = vpop.permute.xlu0 %532
    %535 = vset.pattern.permute.xlu0 2
    %536 = vperm.xlu0 %535, %v47
    %v537 = vpop.permute.xlu0 %536
    %v539 = vlaneseq
    %v540 = vshrl.u32 %v539, 7
    %v541 = vsub.s32 2, %v540
    %v542 = vrot.slane %v21, %v541
    %v543 = vlaneseq
    %v544 = vshrl.u32 %v543, 7
    %v545 = vsub.s32 2, %v544
    %v546 = vrot.slane %v22, %v545
    %v547 = vmul.f32 %v441, %v542
    %v548 = vmul.f32 %v441, %v546
    %v549 = vmul.f32 %v445, %v542
    %v550 = vmul.f32 %v445, %v546
    %v551 = vmul.f32 %v449, %v542
    %v552 = vmul.f32 %v449, %v546
    %v553 = vmul.f32 %v453, %v542
    %v554 = vmul.f32 %v453, %v546
    %v555 = vmul.f32 %v457, %v542
    %v556 = vmul.f32 %v457, %v546
    %v557 = vmul.f32 %v461, %v542
    %v558 = vmul.f32 %v461, %v546
    %v559 = vmul.f32 %v465, %v542
    %v560 = vmul.f32 %v465, %v546
    %v561 = vmul.f32 %v469, %v542
    %v562 = vmul.f32 %v469, %v546
    %v563 = vmul.f32 %v473, %v542
    %v564 = vmul.f32 %v473, %v546
    %v565 = vmul.f32 %v477, %v542
    %v566 = vmul.f32 %v477, %v546
    %v567 = vmul.f32 %v481, %v542
    %v568 = vmul.f32 %v481, %v546
    %v569 = vmul.f32 %v485, %v542
    %v570 = vmul.f32 %v485, %v546
    %v571 = vmul.f32 %v489, %v542
    %v572 = vmul.f32 %v489, %v546
    %v573 = vmul.f32 %v493, %v542
    %v574 = vmul.f32 %v493, %v546
    %v575 = vmul.f32 %v497, %v542
    %v576 = vmul.f32 %v497, %v546
    %v577 = vmul.f32 %v501, %v542
    %v578 = vmul.f32 %v501, %v546
    %v579 = vmul.f32 %v505, %v542
    %v580 = vmul.f32 %v505, %v546
    %v581 = vmul.f32 %v509, %v542
    %v582 = vmul.f32 %v509, %v546
    %v583 = vmul.f32 %v513, %v542
    %v584 = vmul.f32 %v513, %v546
    %v585 = vmul.f32 %v517, %v542
    %v586 = vmul.f32 %v517, %v546
    %v587 = vmul.f32 %v521, %v542
    %v588 = vmul.f32 %v521, %v546
    %v589 = vmul.f32 %v525, %v542
    %v590 = vmul.f32 %v525, %v546
    %v591 = vmul.f32 %v529, %v542
    %v592 = vmul.f32 %v529, %v546
    %v593 = vmul.f32 %v533, %v542
    %v594 = vmul.f32 %v533, %v546
    %v595 = vmul.f32 %v537, %v542
    %v596 = vmul.f32 %v537, %v546
    %v597 = vadd.f32 %v389, %v547
    %v598 = vadd.f32 %v390, %v548
    %v599 = vadd.f32 %v391, %v549
    %v600 = vadd.f32 %v392, %v550
    %v601 = vadd.f32 %v393, %v551
    %v602 = vadd.f32 %v394, %v552
    %v603 = vadd.f32 %v395, %v553
    %v604 = vadd.f32 %v396, %v554
    %v605 = vadd.f32 %v397, %v555
    %v606 = vadd.f32 %v398, %v556
    %v607 = vadd.f32 %v399, %v557
    %v608 = vadd.f32 %v400, %v558
    %v609 = vadd.f32 %v401, %v559
    %v610 = vadd.f32 %v402, %v560
    %v611 = vadd.f32 %v403, %v561
    %v612 = vadd.f32 %v404, %v562
    %v613 = vadd.f32 %v405, %v563
    %v614 = vadd.f32 %v406, %v564
    %v615 = vadd.f32 %v407, %v565
    %v616 = vadd.f32 %v408, %v566
    %v617 = vadd.f32 %v409, %v567
    %v618 = vadd.f32 %v410, %v568
    %v619 = vadd.f32 %v411, %v569
    %v620 = vadd.f32 %v412, %v570
    %v621 = vadd.f32 %v413, %v571
    %v622 = vadd.f32 %v414, %v572
    %v623 = vadd.f32 %v415, %v573
    %v624 = vadd.f32 %v416, %v574
    %v625 = vadd.f32 %v417, %v575
    %v626 = vadd.f32 %v418, %v576
    %v627 = vadd.f32 %v419, %v577
    %v628 = vadd.f32 %v420, %v578
    %v629 = vadd.f32 %v421, %v579
    %v630 = vadd.f32 %v422, %v580
    %v631 = vadd.f32 %v423, %v581
    %v632 = vadd.f32 %v424, %v582
    %v633 = vadd.f32 %v425, %v583
    %v634 = vadd.f32 %v426, %v584
    %v635 = vadd.f32 %v427, %v585
    %v636 = vadd.f32 %v428, %v586
    %v637 = vadd.f32 %v429, %v587
    %v638 = vadd.f32 %v430, %v588
    %v639 = vadd.f32 %v431, %v589
    %v640 = vadd.f32 %v432, %v590
    %v641 = vadd.f32 %v433, %v591
    %v642 = vadd.f32 %v434, %v592
    %v643 = vadd.f32 %v435, %v593
    %v644 = vadd.f32 %v436, %v594
    %v645 = vadd.f32 %v437, %v595
    %v646 = vadd.f32 %v438, %v596
    %647 = vset.pattern.permute.xlu0 3
    %648 = vperm.xlu0 %647, %v23
    %v649 = vpop.permute.xlu0 %648
    %651 = vset.pattern.permute.xlu0 3
    %652 = vperm.xlu0 %651, %v24
    %v653 = vpop.permute.xlu0 %652
    %655 = vset.pattern.permute.xlu0 3
    %656 = vperm.xlu0 %655, %v25
    %v657 = vpop.permute.xlu0 %656
    %659 = vset.pattern.permute.xlu0 3
    %660 = vperm.xlu0 %659, %v26
    %v661 = vpop.permute.xlu0 %660
    %663 = vset.pattern.permute.xlu0 3
    %664 = vperm.xlu0 %663, %v27
    %v665 = vpop.permute.xlu0 %664
    %667 = vset.pattern.permute.xlu0 3
    %668 = vperm.xlu0 %667, %v28
    %v669 = vpop.permute.xlu0 %668
    %671 = vset.pattern.permute.xlu0 3
    %672 = vperm.xlu0 %671, %v29
    %v673 = vpop.permute.xlu0 %672
    %675 = vset.pattern.permute.xlu0 3
    %676 = vperm.xlu0 %675, %v30
    %v677 = vpop.permute.xlu0 %676
    %679 = vset.pattern.permute.xlu0 3
    %680 = vperm.xlu0 %679, %v31
    %v681 = vpop.permute.xlu0 %680
    %683 = vset.pattern.permute.xlu0 3
    %684 = vperm.xlu0 %683, %v32
    %v685 = vpop.permute.xlu0 %684
    %687 = vset.pattern.permute.xlu0 3
    %688 = vperm.xlu0 %687, %v33
    %v689 = vpop.permute.xlu0 %688
    %691 = vset.pattern.permute.xlu0 3
    %692 = vperm.xlu0 %691, %v34
    %v693 = vpop.permute.xlu0 %692
    %695 = vset.pattern.permute.xlu0 3
    %696 = vperm.xlu0 %695, %v35
    %v697 = vpop.permute.xlu0 %696
    %699 = vset.pattern.permute.xlu0 3
    %700 = vperm.xlu0 %699, %v36
    %v701 = vpop.permute.xlu0 %700
    %703 = vset.pattern.permute.xlu0 3
    %704 = vperm.xlu0 %703, %v37
    %v705 = vpop.permute.xlu0 %704
    %707 = vset.pattern.permute.xlu0 3
    %708 = vperm.xlu0 %707, %v38
    %v709 = vpop.permute.xlu0 %708
    %711 = vset.pattern.permute.xlu0 3
    %712 = vperm.xlu0 %711, %v39
    %v713 = vpop.permute.xlu0 %712
    %715 = vset.pattern.permute.xlu0 3
    %716 = vperm.xlu0 %715, %v40
    %v717 = vpop.permute.xlu0 %716
    %719 = vset.pattern.permute.xlu0 3
    %720 = vperm.xlu0 %719, %v41
    %v721 = vpop.permute.xlu0 %720
    %723 = vset.pattern.permute.xlu0 3
    %724 = vperm.xlu0 %723, %v42
    %v725 = vpop.permute.xlu0 %724
    %727 = vset.pattern.permute.xlu0 3
    %728 = vperm.xlu0 %727, %v43
    %v729 = vpop.permute.xlu0 %728
    %731 = vset.pattern.permute.xlu0 3
    %732 = vperm.xlu0 %731, %v44
    %v733 = vpop.permute.xlu0 %732
    %735 = vset.pattern.permute.xlu0 3
    %736 = vperm.xlu0 %735, %v45
    %v737 = vpop.permute.xlu0 %736
    %739 = vset.pattern.permute.xlu0 3
    %740 = vperm.xlu0 %739, %v46
    %v741 = vpop.permute.xlu0 %740
    %743 = vset.pattern.permute.xlu0 3
    %744 = vperm.xlu0 %743, %v47
    %v745 = vpop.permute.xlu0 %744
    %v747 = vlaneseq
    %v748 = vshrl.u32 %v747, 7
    %v749 = vsub.s32 3, %v748
    %v750 = vrot.slane %v21, %v749
    %v751 = vlaneseq
    %v752 = vshrl.u32 %v751, 7
    %v753 = vsub.s32 3, %v752
    %v754 = vrot.slane %v22, %v753
    %v755 = vmul.f32 %v649, %v750
    %v756 = vmul.f32 %v649, %v754
    %v757 = vmul.f32 %v653, %v750
    %v758 = vmul.f32 %v653, %v754
    %v759 = vmul.f32 %v657, %v750
    %v760 = vmul.f32 %v657, %v754
    %v761 = vmul.f32 %v661, %v750
    %v762 = vmul.f32 %v661, %v754
    %v763 = vmul.f32 %v665, %v750
    %v764 = vmul.f32 %v665, %v754
    %v765 = vmul.f32 %v669, %v750
    %v766 = vmul.f32 %v669, %v754
    %v767 = vmul.f32 %v673, %v750
    %v768 = vmul.f32 %v673, %v754
    %v769 = vmul.f32 %v677, %v750
    %v770 = vmul.f32 %v677, %v754
    %v771 = vmul.f32 %v681, %v750
    %v772 = vmul.f32 %v681, %v754
    %v773 = vmul.f32 %v685, %v750
    %v774 = vmul.f32 %v685, %v754
    %v775 = vmul.f32 %v689, %v750
    %v776 = vmul.f32 %v689, %v754
    %v777 = vmul.f32 %v693, %v750
    %v778 = vmul.f32 %v693, %v754
    %v779 = vmul.f32 %v697, %v750
    %v780 = vmul.f32 %v697, %v754
    %v781 = vmul.f32 %v701, %v750
    %v782 = vmul.f32 %v701, %v754
    %v783 = vmul.f32 %v705, %v750
    %v784 = vmul.f32 %v705, %v754
    %v785 = vmul.f32 %v709, %v750
    %v786 = vmul.f32 %v709, %v754
    %v787 = vmul.f32 %v713, %v750
    %v788 = vmul.f32 %v713, %v754
    %v789 = vmul.f32 %v717, %v750
    %v790 = vmul.f32 %v717, %v754
    %v791 = vmul.f32 %v721, %v750
    %v792 = vmul.f32 %v721, %v754
    %v793 = vmul.f32 %v725, %v750
    %v794 = vmul.f32 %v725, %v754
    %v795 = vmul.f32 %v729, %v750
    %v796 = vmul.f32 %v729, %v754
    %v797 = vmul.f32 %v733, %v750
    %v798 = vmul.f32 %v733, %v754
    %v799 = vmul.f32 %v737, %v750
    %v800 = vmul.f32 %v737, %v754
    %v801 = vmul.f32 %v741, %v750
    %v802 = vmul.f32 %v741, %v754
    %v803 = vmul.f32 %v745, %v750
    %v804 = vmul.f32 %v745, %v754
    %v805 = vadd.f32 %v597, %v755
    %v806 = vadd.f32 %v598, %v756
    %v807 = vadd.f32 %v599, %v757
    %v808 = vadd.f32 %v600, %v758
    %v809 = vadd.f32 %v601, %v759
    %v810 = vadd.f32 %v602, %v760
    %v811 = vadd.f32 %v603, %v761
    %v812 = vadd.f32 %v604, %v762
    %v813 = vadd.f32 %v605, %v763
    %v814 = vadd.f32 %v606, %v764
    %v815 = vadd.f32 %v607, %v765
    %v816 = vadd.f32 %v608, %v766
    %v817 = vadd.f32 %v609, %v767
    %v818 = vadd.f32 %v610, %v768
    %v819 = vadd.f32 %v611, %v769
    %v820 = vadd.f32 %v612, %v770
    %v821 = vadd.f32 %v613, %v771
    %v822 = vadd.f32 %v614, %v772
    %v823 = vadd.f32 %v615, %v773
    %v824 = vadd.f32 %v616, %v774
    %v825 = vadd.f32 %v617, %v775
    %v826 = vadd.f32 %v618, %v776
    %v827 = vadd.f32 %v619, %v777
    %v828 = vadd.f32 %v620, %v778
    %v829 = vadd.f32 %v621, %v779
    %v830 = vadd.f32 %v622, %v780
    %v831 = vadd.f32 %v623, %v781
    %v832 = vadd.f32 %v624, %v782
    %v833 = vadd.f32 %v625, %v783
    %v834 = vadd.f32 %v626, %v784
    %v835 = vadd.f32 %v627, %v785
    %v836 = vadd.f32 %v628, %v786
    %v837 = vadd.f32 %v629, %v787
    %v838 = vadd.f32 %v630, %v788
    %v839 = vadd.f32 %v631, %v789
    %v840 = vadd.f32 %v632, %v790
    %v841 = vadd.f32 %v633, %v791
    %v842 = vadd.f32 %v634, %v792
    %v843 = vadd.f32 %v635, %v793
    %v844 = vadd.f32 %v636, %v794
    %v845 = vadd.f32 %v637, %v795
    %v846 = vadd.f32 %v638, %v796
    %v847 = vadd.f32 %v639, %v797
    %v848 = vadd.f32 %v640, %v798
    %v849 = vadd.f32 %v641, %v799
    %v850 = vadd.f32 %v642, %v800
    %v851 = vadd.f32 %v643, %v801
    %v852 = vadd.f32 %v644, %v802
    %v853 = vadd.f32 %v645, %v803
    %v854 = vadd.f32 %v646, %v804
    %855 = vset.pattern.permute.xlu0 4
    %856 = vperm.xlu0 %855, %v23
    %v857 = vpop.permute.xlu0 %856
    %859 = vset.pattern.permute.xlu0 4
    %860 = vperm.xlu0 %859, %v24
    %v861 = vpop.permute.xlu0 %860
    %863 = vset.pattern.permute.xlu0 4
    %864 = vperm.xlu0 %863, %v25
    %v865 = vpop.permute.xlu0 %864
    %867 = vset.pattern.permute.xlu0 4
    %868 = vperm.xlu0 %867, %v26
    %v869 = vpop.permute.xlu0 %868
    %871 = vset.pattern.permute.xlu0 4
    %872 = vperm.xlu0 %871, %v27
    %v873 = vpop.permute.xlu0 %872
    %875 = vset.pattern.permute.xlu0 4
    %876 = vperm.xlu0 %875, %v28
    %v877 = vpop.permute.xlu0 %876
    %879 = vset.pattern.permute.xlu0 4
    %880 = vperm.xlu0 %879, %v29
    %v881 = vpop.permute.xlu0 %880
    %883 = vset.pattern.permute.xlu0 4
    %884 = vperm.xlu0 %883, %v30
    %v885 = vpop.permute.xlu0 %884
    %887 = vset.pattern.permute.xlu0 4
    %888 = vperm.xlu0 %887, %v31
    %v889 = vpop.permute.xlu0 %888
    %891 = vset.pattern.permute.xlu0 4
    %892 = vperm.xlu0 %891, %v32
    %v893 = vpop.permute.xlu0 %892
    %895 = vset.pattern.permute.xlu0 4
    %896 = vperm.xlu0 %895, %v33
    %v897 = vpop.permute.xlu0 %896
    %899 = vset.pattern.permute.xlu0 4
    %900 = vperm.xlu0 %899, %v34
    %v901 = vpop.permute.xlu0 %900
    %903 = vset.pattern.permute.xlu0 4
    %904 = vperm.xlu0 %903, %v35
    %v905 = vpop.permute.xlu0 %904
    %907 = vset.pattern.permute.xlu0 4
    %908 = vperm.xlu0 %907, %v36
    %v909 = vpop.permute.xlu0 %908
    %911 = vset.pattern.permute.xlu0 4
    %912 = vperm.xlu0 %911, %v37
    %v913 = vpop.permute.xlu0 %912
    %915 = vset.pattern.permute.xlu0 4
    %916 = vperm.xlu0 %915, %v38
    %v917 = vpop.permute.xlu0 %916
    %919 = vset.pattern.permute.xlu0 4
    %920 = vperm.xlu0 %919, %v39
    %v921 = vpop.permute.xlu0 %920
    %923 = vset.pattern.permute.xlu0 4
    %924 = vperm.xlu0 %923, %v40
    %v925 = vpop.permute.xlu0 %924
    %927 = vset.pattern.permute.xlu0 4
    %928 = vperm.xlu0 %927, %v41
    %v929 = vpop.permute.xlu0 %928
    %931 = vset.pattern.permute.xlu0 4
    %932 = vperm.xlu0 %931, %v42
    %v933 = vpop.permute.xlu0 %932
    %935 = vset.pattern.permute.xlu0 4
    %936 = vperm.xlu0 %935, %v43
    %v937 = vpop.permute.xlu0 %936
    %939 = vset.pattern.permute.xlu0 4
    %940 = vperm.xlu0 %939, %v44
    %v941 = vpop.permute.xlu0 %940
    %943 = vset.pattern.permute.xlu0 4
    %944 = vperm.xlu0 %943, %v45
    %v945 = vpop.permute.xlu0 %944
    %947 = vset.pattern.permute.xlu0 4
    %948 = vperm.xlu0 %947, %v46
    %v949 = vpop.permute.xlu0 %948
    %951 = vset.pattern.permute.xlu0 4
    %952 = vperm.xlu0 %951, %v47
    %v953 = vpop.permute.xlu0 %952
    %v955 = vlaneseq
    %v956 = vshrl.u32 %v955, 7
    %v957 = vsub.s32 4, %v956
    %v958 = vrot.slane %v21, %v957
    %v959 = vlaneseq
    %v960 = vshrl.u32 %v959, 7
    %v961 = vsub.s32 4, %v960
    %v962 = vrot.slane %v22, %v961
    %v963 = vmul.f32 %v857, %v958
    %v964 = vmul.f32 %v857, %v962
    %v965 = vmul.f32 %v861, %v958
    %v966 = vmul.f32 %v861, %v962
    %v967 = vmul.f32 %v865, %v958
    %v968 = vmul.f32 %v865, %v962
    %v969 = vmul.f32 %v869, %v958
    %v970 = vmul.f32 %v869, %v962
    %v971 = vmul.f32 %v873, %v958
    %v972 = vmul.f32 %v873, %v962
    %v973 = vmul.f32 %v877, %v958
    %v974 = vmul.f32 %v877, %v962
    %v975 = vmul.f32 %v881, %v958
    %v976 = vmul.f32 %v881, %v962
    %v977 = vmul.f32 %v885, %v958
    %v978 = vmul.f32 %v885, %v962
    %v979 = vmul.f32 %v889, %v958
    %v980 = vmul.f32 %v889, %v962
    %v981 = vmul.f32 %v893, %v958
    %v982 = vmul.f32 %v893, %v962
    %v983 = vmul.f32 %v897, %v958
    %v984 = vmul.f32 %v897, %v962
    %v985 = vmul.f32 %v901, %v958
    %v986 = vmul.f32 %v901, %v962
    %v987 = vmul.f32 %v905, %v958
    %v988 = vmul.f32 %v905, %v962
    %v989 = vmul.f32 %v909, %v958
    %v990 = vmul.f32 %v909, %v962
    %v991 = vmul.f32 %v913, %v958
    %v992 = vmul.f32 %v913, %v962
    %v993 = vmul.f32 %v917, %v958
    %v994 = vmul.f32 %v917, %v962
    %v995 = vmul.f32 %v921, %v958
    %v996 = vmul.f32 %v921, %v962
    %v997 = vmul.f32 %v925, %v958
    %v998 = vmul.f32 %v925, %v962
    %v999 = vmul.f32 %v929, %v958
    %v1000 = vmul.f32 %v929, %v962
    %v1001 = vmul.f32 %v933, %v958
    %v1002 = vmul.f32 %v933, %v962
    %v1003 = vmul.f32 %v937, %v958
    %v1004 = vmul.f32 %v937, %v962
    %v1005 = vmul.f32 %v941, %v958
    %v1006 = vmul.f32 %v941, %v962
    %v1007 = vmul.f32 %v945, %v958
    %v1008 = vmul.f32 %v945, %v962
    %v1009 = vmul.f32 %v949, %v958
    %v1010 = vmul.f32 %v949, %v962
    %v1011 = vmul.f32 %v953, %v958
    %v1012 = vmul.f32 %v953, %v962
    %v1013 = vadd.f32 %v805, %v963
    %v1014 = vadd.f32 %v806, %v964
    %v1015 = vadd.f32 %v807, %v965
    %v1016 = vadd.f32 %v808, %v966
    %v1017 = vadd.f32 %v809, %v967
    %v1018 = vadd.f32 %v810, %v968
    %v1019 = vadd.f32 %v811, %v969
    %v1020 = vadd.f32 %v812, %v970
    %v1021 = vadd.f32 %v813, %v971
    %v1022 = vadd.f32 %v814, %v972
    %v1023 = vadd.f32 %v815, %v973
    %v1024 = vadd.f32 %v816, %v974
    %v1025 = vadd.f32 %v817, %v975
    %v1026 = vadd.f32 %v818, %v976
    %v1027 = vadd.f32 %v819, %v977
    %v1028 = vadd.f32 %v820, %v978
    %v1029 = vadd.f32 %v821, %v979
    %v1030 = vadd.f32 %v822, %v980
    %v1031 = vadd.f32 %v823, %v981
    %v1032 = vadd.f32 %v824, %v982
    %v1033 = vadd.f32 %v825, %v983
    %v1034 = vadd.f32 %v826, %v984
    %v1035 = vadd.f32 %v827, %v985
    %v1036 = vadd.f32 %v828, %v986
    %v1037 = vadd.f32 %v829, %v987
    %v1038 = vadd.f32 %v830, %v988
    %v1039 = vadd.f32 %v831, %v989
    %v1040 = vadd.f32 %v832, %v990
    %v1041 = vadd.f32 %v833, %v991
    %v1042 = vadd.f32 %v834, %v992
    %v1043 = vadd.f32 %v835, %v993
    %v1044 = vadd.f32 %v836, %v994
    %v1045 = vadd.f32 %v837, %v995
    %v1046 = vadd.f32 %v838, %v996
    %v1047 = vadd.f32 %v839, %v997
    %v1048 = vadd.f32 %v840, %v998
    %v1049 = vadd.f32 %v841, %v999
    %v1050 = vadd.f32 %v842, %v1000
    %v1051 = vadd.f32 %v843, %v1001
    %v1052 = vadd.f32 %v844, %v1002
    %v1053 = vadd.f32 %v845, %v1003
    %v1054 = vadd.f32 %v846, %v1004
    %v1055 = vadd.f32 %v847, %v1005
    %v1056 = vadd.f32 %v848, %v1006
    %v1057 = vadd.f32 %v849, %v1007
    %v1058 = vadd.f32 %v850, %v1008
    %v1059 = vadd.f32 %v851, %v1009
    %v1060 = vadd.f32 %v852, %v1010
    %v1061 = vadd.f32 %v853, %v1011
    %v1062 = vadd.f32 %v854, %v1012
    %v1063 = vld [vmem:[%s2] sm:$0xff]
    %v1064 = vld [vmem:[%s2 + $0x8] sm:$0xff]
    %v1065 = vld [vmem:[%s2 + $0x10] sm:$0xff]
    %v1066 = vld [vmem:[%s2 + $0x18] sm:$0xff]
    %v1067 = vld [vmem:[%s2 + $0x20] sm:$0xff]
    %v1068 = vld [vmem:[%s2 + $0x28] sm:$0xff]
    %v1069 = vld [vmem:[%s2 + $0x30] sm:$0xff]
    %v1070 = vld [vmem:[%s2 + $0x38] sm:$0xff]
    %v1071 = vld [vmem:[%s2 + $0x40] sm:$0xff]
    %v1072 = vld [vmem:[%s2 + $0x48] sm:$0xff]
    %v1073 = vld [vmem:[%s2 + $0x50] sm:$0xff]
    %v1074 = vld [vmem:[%s2 + $0x58] sm:$0xff]
    %v1075 = vld [vmem:[%s2 + $0x60] sm:$0xff]
    %v1076 = vld [vmem:[%s2 + $0x68] sm:$0xff]
    %v1077 = vld [vmem:[%s2 + $0x70] sm:$0xff]
    %v1078 = vld [vmem:[%s2 + $0x78] sm:$0xff]
    %v1079 = vld [vmem:[%s2 + $0x80] sm:$0xff]
    %v1080 = vld [vmem:[%s2 + $0x88] sm:$0xff]
    %v1081 = vld [vmem:[%s2 + $0x90] sm:$0xff]
    %v1082 = vld [vmem:[%s2 + $0x98] sm:$0xff]
    %v1083 = vld [vmem:[%s2 + $0xa0] sm:$0xff]
    %v1084 = vld [vmem:[%s2 + $0xa8] sm:$0xff]
    %v1085 = vld [vmem:[%s2 + $0xb0] sm:$0xff]
    %v1086 = vld [vmem:[%s2 + $0xb8] sm:$0xff]
    %v1087 = vld [vmem:[%s2 + $0xc0] sm:$0xff]
    %1089 = vset.pattern.permute.xlu0 0
    %1090 = vperm.xlu0 %1089, %v1063
    %v1091 = vpop.permute.xlu0 %1090
    %1094 = vset.pattern.permute.xlu0 0
    %1095 = vperm.xlu0 %1094, %v1064
    %v1096 = vpop.permute.xlu0 %1095
    %1099 = vset.pattern.permute.xlu0 0
    %1100 = vperm.xlu0 %1099, %v1065
    %v1101 = vpop.permute.xlu0 %1100
    %1104 = vset.pattern.permute.xlu0 0
    %1105 = vperm.xlu0 %1104, %v1066
    %v1106 = vpop.permute.xlu0 %1105
    %1109 = vset.pattern.permute.xlu0 0
    %1110 = vperm.xlu0 %1109, %v1067
    %v1111 = vpop.permute.xlu0 %1110
    %1114 = vset.pattern.permute.xlu0 0
    %1115 = vperm.xlu0 %1114, %v1068
    %v1116 = vpop.permute.xlu0 %1115
    %1119 = vset.pattern.permute.xlu0 0
    %1120 = vperm.xlu0 %1119, %v1069
    %v1121 = vpop.permute.xlu0 %1120
    %1124 = vset.pattern.permute.xlu0 0
    %1125 = vperm.xlu0 %1124, %v1070
    %v1126 = vpop.permute.xlu0 %1125
    %1129 = vset.pattern.permute.xlu0 0
    %1130 = vperm.xlu0 %1129, %v1071
    %v1131 = vpop.permute.xlu0 %1130
    %1134 = vset.pattern.permute.xlu0 0
    %1135 = vperm.xlu0 %1134, %v1072
    %v1136 = vpop.permute.xlu0 %1135
    %1139 = vset.pattern.permute.xlu0 0
    %1140 = vperm.xlu0 %1139, %v1073
    %v1141 = vpop.permute.xlu0 %1140
    %1144 = vset.pattern.permute.xlu0 0
    %1145 = vperm.xlu0 %1144, %v1074
    %v1146 = vpop.permute.xlu0 %1145
    %1149 = vset.pattern.permute.xlu0 0
    %1150 = vperm.xlu0 %1149, %v1075
    %v1151 = vpop.permute.xlu0 %1150
    %1154 = vset.pattern.permute.xlu0 0
    %1155 = vperm.xlu0 %1154, %v1076
    %v1156 = vpop.permute.xlu0 %1155
    %1159 = vset.pattern.permute.xlu0 0
    %1160 = vperm.xlu0 %1159, %v1077
    %v1161 = vpop.permute.xlu0 %1160
    %1164 = vset.pattern.permute.xlu0 0
    %1165 = vperm.xlu0 %1164, %v1078
    %v1166 = vpop.permute.xlu0 %1165
    %1169 = vset.pattern.permute.xlu0 0
    %1170 = vperm.xlu0 %1169, %v1079
    %v1171 = vpop.permute.xlu0 %1170
    %1174 = vset.pattern.permute.xlu0 0
    %1175 = vperm.xlu0 %1174, %v1080
    %v1176 = vpop.permute.xlu0 %1175
    %1179 = vset.pattern.permute.xlu0 0
    %1180 = vperm.xlu0 %1179, %v1081
    %v1181 = vpop.permute.xlu0 %1180
    %1184 = vset.pattern.permute.xlu0 0
    %1185 = vperm.xlu0 %1184, %v1082
    %v1186 = vpop.permute.xlu0 %1185
    %1189 = vset.pattern.permute.xlu0 0
    %1190 = vperm.xlu0 %1189, %v1083
    %v1191 = vpop.permute.xlu0 %1190
    %1194 = vset.pattern.permute.xlu0 0
    %1195 = vperm.xlu0 %1194, %v1084
    %v1196 = vpop.permute.xlu0 %1195
    %1199 = vset.pattern.permute.xlu0 0
    %1200 = vperm.xlu0 %1199, %v1085
    %v1201 = vpop.permute.xlu0 %1200
    %1204 = vset.pattern.permute.xlu0 0
    %1205 = vperm.xlu0 %1204, %v1086
    %v1206 = vpop.permute.xlu0 %1205
    %1209 = vset.pattern.permute.xlu0 0
    %1210 = vperm.xlu0 %1209, %v1087
    %v1211 = vpop.permute.xlu0 %1210
    %v1213 = vadd.f32 %v1013, %v1091
    %v1214 = vadd.f32 %v1014, %v1091
    %v1215 = vadd.f32 %v1015, %v1096
    %v1216 = vadd.f32 %v1016, %v1096
    %v1217 = vadd.f32 %v1017, %v1101
    %v1218 = vadd.f32 %v1018, %v1101
    %v1219 = vadd.f32 %v1019, %v1106
    %v1220 = vadd.f32 %v1020, %v1106
    %v1221 = vadd.f32 %v1021, %v1111
    %v1222 = vadd.f32 %v1022, %v1111
    %v1223 = vadd.f32 %v1023, %v1116
    %v1224 = vadd.f32 %v1024, %v1116
    %v1225 = vadd.f32 %v1025, %v1121
    %v1226 = vadd.f32 %v1026, %v1121
    %v1227 = vadd.f32 %v1027, %v1126
    %v1228 = vadd.f32 %v1028, %v1126
    %v1229 = vadd.f32 %v1029, %v1131
    %v1230 = vadd.f32 %v1030, %v1131
    %v1231 = vadd.f32 %v1031, %v1136
    %v1232 = vadd.f32 %v1032, %v1136
    %v1233 = vadd.f32 %v1033, %v1141
    %v1234 = vadd.f32 %v1034, %v1141
    %v1235 = vadd.f32 %v1035, %v1146
    %v1236 = vadd.f32 %v1036, %v1146
    %v1237 = vadd.f32 %v1037, %v1151
    %v1238 = vadd.f32 %v1038, %v1151
    %v1239 = vadd.f32 %v1039, %v1156
    %v1240 = vadd.f32 %v1040, %v1156
    %v1241 = vadd.f32 %v1041, %v1161
    %v1242 = vadd.f32 %v1042, %v1161
    %v1243 = vadd.f32 %v1043, %v1166
    %v1244 = vadd.f32 %v1044, %v1166
    %v1245 = vadd.f32 %v1045, %v1171
    %v1246 = vadd.f32 %v1046, %v1171
    %v1247 = vadd.f32 %v1047, %v1176
    %v1248 = vadd.f32 %v1048, %v1176
    %v1249 = vadd.f32 %v1049, %v1181
    %v1250 = vadd.f32 %v1050, %v1181
    %v1251 = vadd.f32 %v1051, %v1186
    %v1252 = vadd.f32 %v1052, %v1186
    %v1253 = vadd.f32 %v1053, %v1191
    %v1254 = vadd.f32 %v1054, %v1191
    %v1255 = vadd.f32 %v1055, %v1196
    %v1256 = vadd.f32 %v1056, %v1196
    %v1257 = vadd.f32 %v1057, %v1201
    %v1258 = vadd.f32 %v1058, %v1201
    %v1259 = vadd.f32 %v1059, %v1206
    %v1260 = vadd.f32 %v1060, %v1206
    %v1261 = vadd.f32 %v1061, %v1211
    %v1262 = vadd.f32 %v1062, %v1211
    %v1263 = vmax.f32 %v1213, 0.0
    %v1264 = vmax.f32 %v1214, 0.0
    %v1265 = vmax.f32 %v1215, 0.0
    %v1266 = vmax.f32 %v1216, 0.0
    %v1267 = vmax.f32 %v1217, 0.0
    %v1268 = vmax.f32 %v1218, 0.0
    %v1269 = vmax.f32 %v1219, 0.0
    %v1270 = vmax.f32 %v1220, 0.0
    %v1271 = vmax.f32 %v1221, 0.0
    %v1272 = vmax.f32 %v1222, 0.0
    %v1273 = vmax.f32 %v1223, 0.0
    %v1274 = vmax.f32 %v1224, 0.0
    %v1275 = vmax.f32 %v1225, 0.0
    %v1276 = vmax.f32 %v1226, 0.0
    %v1277 = vmax.f32 %v1227, 0.0
    %v1278 = vmax.f32 %v1228, 0.0
    %v1279 = vmax.f32 %v1229, 0.0
    %v1280 = vmax.f32 %v1230, 0.0
    %v1281 = vmax.f32 %v1231, 0.0
    %v1282 = vmax.f32 %v1232, 0.0
    %v1283 = vmax.f32 %v1233, 0.0
    %v1284 = vmax.f32 %v1234, 0.0
    %v1285 = vmax.f32 %v1235, 0.0
    %v1286 = vmax.f32 %v1236, 0.0
    %v1287 = vmax.f32 %v1237, 0.0
    %v1288 = vmax.f32 %v1238, 0.0
    %v1289 = vmax.f32 %v1239, 0.0
    %v1290 = vmax.f32 %v1240, 0.0
    %v1291 = vmax.f32 %v1241, 0.0
    %v1292 = vmax.f32 %v1242, 0.0
    %v1293 = vmax.f32 %v1243, 0.0
    %v1294 = vmax.f32 %v1244, 0.0
    %v1295 = vmax.f32 %v1245, 0.0
    %v1296 = vmax.f32 %v1246, 0.0
    %v1297 = vmax.f32 %v1247, 0.0
    %v1298 = vmax.f32 %v1248, 0.0
    %v1299 = vmax.f32 %v1249, 0.0
    %v1300 = vmax.f32 %v1250, 0.0
    %v1301 = vmax.f32 %v1251, 0.0
    %v1302 = vmax.f32 %v1252, 0.0
    %v1303 = vmax.f32 %v1253, 0.0
    %v1304 = vmax.f32 %v1254, 0.0
    %v1305 = vmax.f32 %v1255, 0.0
    %v1306 = vmax.f32 %v1256, 0.0
    %v1307 = vmax.f32 %v1257, 0.0
    %v1308 = vmax.f32 %v1258, 0.0
    %v1309 = vmax.f32 %v1259, 0.0
    %v1310 = vmax.f32 %v1260, 0.0
    %v1311 = vmax.f32 %v1261, 0.0
    %v1312 = vmax.f32 %v1262, 0.0
    %v1313 = vld [vmem:[%s3] sm:$0xff]
    %v1314 = vld [vmem:[%s4] sm:$0xf]
    %1316 = vset.pattern.permute.xlu0 0
    %1317 = vperm.xlu0 %1316, %v1314
    %v1318 = vpop.permute.xlu0 %1317
    %v1321 = vcombine.high %v1313, %v1313
    %vm1322 = vcmask 588800
    %v1323 = vsel %vm1322, %v1321, 0
    %1325 = vmatprep.subr.mxu0 %v1264
    %1326 = vmatpush1.msra.mxu0 %v1263
    %1327 = vmatprep.subr.mxu0 %v1266
    %1328 = vmatpush1.msra.mxu0 %v1265
    %1329 = vmatprep.subr.mxu0 %v1268
    %1330 = vmatpush1.msra.mxu0 %v1267
    %1331 = vmatprep.subr.mxu0 %v1270
    %1332 = vmatpush1.msra.mxu0 %v1269
    %1333 = vmatprep.subr.mxu0 %v1272
    %1334 = vmatpush1.msra.mxu0 %v1271
    %1335 = vmatprep.subr.mxu0 %v1274
    %1336 = vmatpush1.msra.mxu0 %v1273
    %1337 = vmatprep.subr.mxu0 %v1276
    %1338 = vmatpush1.msra.mxu0 %v1275
    %1339 = vmatprep.subr.mxu0 %v1278
    %1340 = vmatpush1.msra.mxu0 %v1277
    %1341 = vmatprep.subr.mxu0 %v1280
    %1342 = vmatpush1.msra.mxu0 %v1279
    %1343 = vmatprep.subr.mxu0 %v1282
    %1344 = vmatpush1.msra.mxu0 %v1281
    %1345 = vmatprep.subr.mxu0 %v1284
    %1346 = vmatpush1.msra.mxu0 %v1283
    %1347 = vmatprep.subr.mxu0 %v1286
    %1348 = vmatpush1.msra.mxu0 %v1285
    %1349 = vmatprep.subr.mxu0 %v1288
    %1350 = vmatpush1.msra.mxu0 %v1287
    %1351 = vmatprep.subr.mxu0 %v1290
    %1352 = vmatpush1.msra.mxu0 %v1289
    %1353 = vmatprep.subr.mxu0 %v1292
    %1354 = vmatpush1.msra.mxu0 %v1291
    %1355 = vmatprep.subr.mxu0 %v1294
    %1356 = vmatpush1.msra.mxu0 %v1293
    %1357 = vmatprep.subr.mxu0 %v1296
    %1358 = vmatpush1.msra.mxu0 %v1295
    %1359 = vmatprep.subr.mxu0 %v1298
    %1360 = vmatpush1.msra.mxu0 %v1297
    %1361 = vmatprep.subr.mxu0 %v1300
    %1362 = vmatpush1.msra.mxu0 %v1299
    %1363 = vmatprep.subr.mxu0 %v1302
    %1364 = vmatpush1.msra.mxu0 %v1301
    %1365 = vmatprep.subr.mxu0 %v1304
    %1366 = vmatpush1.msra.mxu0 %v1303
    %1367 = vmatprep.subr.mxu0 %v1306
    %1368 = vmatpush1.msra.mxu0 %v1305
    %1369 = vmatprep.subr.mxu0 %v1308
    %1370 = vmatpush1.msra.mxu0 %v1307
    %1371 = vmatprep.subr.mxu0 %v1310
    %1372 = vmatpush1.msra.mxu0 %v1309
    %1373 = vmatprep.subr.mxu0 %v1312
    %1374 = vmatpush1.msra.mxu0 %v1311
    %1375 = vmatprep.subr.mxu0 0.0
    %1376 = vmatpush1.msra.mxu0 0.0
    %1377 = vmatprep.subr.mxu0 0.0
    %1378 = vmatpush1.msra.mxu0 0.0
    %1379 = vmatprep.subr.mxu0 0.0
    %1380 = vmatpush1.msra.mxu0 0.0
    %1381 = vmatprep.subr.mxu0 0.0
    %1382 = vmatpush1.msra.mxu0 0.0
    %1383 = vmatprep.subr.mxu0 0.0
    %1384 = vmatpush1.msra.mxu0 0.0
    %1385 = vmatprep.subr.mxu0 0.0
    %1386 = vmatpush1.msra.mxu0 0.0
    %1387 = vmatprep.subr.mxu0 0.0
    %1388 = vmatpush1.msra.mxu0 0.0
    %1389 = vmatprep.mubr.f32.mxu0 %v1323
    %1390 = vmatmul.mubr.f32.gmra.mrb[0].mxu0 %v1313
    %v1391 = vpop.f32.mrb[0].mxu0
    %v1392 = vadd.f32 %v1318, %v1391
    %v1393 = vpop.f32.mrb[0].mxu0
    %v1394 = vadd.f32 %v1318, %v1393
    %1395 = vdwg.mxu0
    %v1398 = vcombine.low %v1392, %v1394
    %1400 = vst [vmem:[#allocation2] sm:$0xff] %v1398
    // Predicated region
    $region22: #{tpu_custom_call.1} parent=1 // pred_check
      _
    $region23: #{tpu_custom_call.1} parent=1 // pred_check_branch
      %1402 = sbr.rel (0) target = $region25
    $region24: #{tpu_custom_call.1} parent=1 // pred_region
      %s1404 = ssub.s32 128, 128
      %1405 = vsyncadd [#allocation3], %s1404
      %s1407 = sshll.u32 [#allocation2], 4
      %s1408 = int_to_ptr.vmem [resolvable:$true] %s1407
      %1410 = dma.vmem_to_hbm [thread:$0]  %s1408, 128, %s5, [#allocation3]
    $region25: #{tpu_custom_call.1} parent=1 // pred_fallthru
      _
    // Predicated region
    $region26: #{tpu_custom_call.1} parent=1 // pred_check
      _
    $region27: #{tpu_custom_call.1} parent=1 // pred_check_branch
      %1412 = sbr.rel (0) target = $region29
    $region28: #{tpu_custom_call.1} parent=1 // pred_region
      %1413 = dma.done [#allocation3], 128
    $region29: #{tpu_custom_call.1} parent=1 // pred_fallthru
      _
    %1414 = vsyncpa [#allocation3], 1

</llo_original>
